<compile_context>
chip_gen: v6e
topology: v6e:2x2x1
jax: 0.10.0
libtpu: 0.0.40
codegen_flags: <defaults>
</compile_context>

<pallas_src>
import functools

import jax
import jax.numpy as jnp
from jax.experimental import pallas as pl
from jax.experimental.pallas import tpu as pltpu

NUM_NODES = 3          # num_nodes
NUM_OPS_PER_NODE = 2   # num_ops_per_node
NUM_PREDECESSORS = 1   # num_predecessors (input is a list of 1 tensor)


def _cell_fused_kernel(x_ref, w_ref, b_ref, o_ref, *, num_ops: int):
    # x_ref: (TM, C)           bf16 tile of flattened pixels (lane dim = channels)
    # w_ref: (C, K*N*C)        bf16, all (op, node) weights fused along N (k-major, node-minor)
    # b_ref: (1, K*N*C)        f32 biases, same column layout as w_ref
    # o_ref: (TM, N*C)         this tile's slice of the channel-concatenated cell output
    nc = o_ref.shape[-1]                                   # num_nodes * C
    y = jnp.dot(x_ref[...], w_ref[...],
                preferred_element_type=jnp.float32)        # one wide MXU matmul
    y = jnp.maximum(y + b_ref[...], 0.0)                   # ReLU(op_k(x)) for every (k, node)
    acc = y[:, :nc]
    for k in range(1, num_ops):                            # node output = sum_k op_k(x)
        acc = acc + y[:, k * nc:(k + 1) * nc]              # static, 128-lane-aligned slices
    o_ref[...] = acc.astype(o_ref.dtype)


def _cell_forward_2d(x2d, weights, biases, *, block_m: int = 1024):
    """Core NHWC-flattened path: x2d (M, C) -> (M, num_nodes*C)."""
    M, C = x2d.shape
    n_nodes, K = weights.shape[0], weights.shape[1]
    NC = n_nodes * C

    # Fuse all (node, op) weights into one (C, K*N*C) matrix, k-major / node-minor,
    # so summing over ops is a K-way add of contiguous (TM, N*C) slabs.
    w_all = jnp.transpose(weights, (2, 1, 0, 3)).reshape(C, K * NC).astype(jnp.bfloat16)
    b_all = jnp.transpose(biases[:, :, 0, :], (1, 0, 2)).reshape(1, K * NC).astype(jnp.float32)

    # M tiling: TM multiple of 8, remainder rows zero-padded then sliced off.
    tm = min(block_m, ((M + 7) // 8) * 8)
    m_pad = pl.cdiv(M, tm) * tm
    x_in = x2d.astype(jnp.bfloat16)
    if m_pad != M:
        x_in = jnp.pad(x_in, ((0, m_pad - M), (0, 0)))

    out2d = pl.pallas_call(
        functools.partial(_cell_fused_kernel, num_ops=K),
        out_shape=jax.ShapeDtypeStruct((m_pad, NC), x2d.dtype),
        grid_spec=pltpu.PrefetchScalarGridSpec(
            num_scalar_prefetch=0,
            grid=(m_pad // tm,),                              # tiles of pixels only
            in_specs=[
                pl.BlockSpec((tm, C), lambda m: (m, 0)),      # streamed input tile
                pl.BlockSpec((C, K * NC), lambda m: (0, 0)),  # resident fused weights (~192 KiB bf16)
                pl.BlockSpec((1, K * NC), lambda m: (0, 0)),  # resident fused biases
            ],
            out_specs=pl.BlockSpec((tm, NC), lambda m: (m, 0)),  # lane-dense concat layout
        ),
        compiler_params=pltpu.CompilerParams(
            dimension_semantics=("parallel",),                # M axis -> megacore friendly
            vmem_limit_bytes=32 * 1024 * 1024),
    )(x_in, w_all, b_all)

    if m_pad != M:
        out2d = out2d[:M]
    return out2d


def cell_forward(xs, weights, biases, *, block_m: int = 1024):
    """xs: list of NCHW tensors (len == NUM_PREDECESSORS).
    weights: (num_nodes, K, C, C) with (C_in, C_out) layout, biases: (num_nodes, K, 1, C).
    Returns NCHW (B, num_nodes*C, H, W)."""
    # InputChoice default forward picks candidate_inputs[0] == states[0].
    x = xs[0]
    B, C, H, W = x.shape
    # TODO(synk): if the surrounding model is NHWC end-to-end, call _cell_forward_2d
    # directly and skip these layout transposes (they are pure XLA plumbing here).
    x2d = jnp.transpose(x, (0, 2, 3, 1)).reshape(B * H * W, C)
    out2d = _cell_forward_2d(x2d, weights, biases, block_m=block_m)
    out = out2d.reshape(B, H, W, weights.shape[0] * C)
    return jnp.transpose(out, (0, 3, 1, 2))  # back to NCHW


def cell_forward_ref(xs, weights, biases):
    # Pure-JAX reference mirroring the PyTorch forward (inputs rounded to bf16
    # to match the kernel's matmul dtype; accumulation in f32).
    x = xs[0]
    B, C, H, W = x.shape
    x2d = jnp.transpose(x, (0, 2, 3, 1)).reshape(-1, C)
    xq = x2d.astype(jnp.bfloat16).astype(jnp.float32)
    node_outs = []
    for i in range(weights.shape[0]):
        acc = jnp.zeros((x2d.shape[0], C), jnp.float32)
        for k in range(weights.shape[1]):
            wq = weights[i, k].astype(jnp.bfloat16).astype(jnp.float32)
            acc = acc + jnp.maximum(xq @ wq + biases[i, k, 0], 0.0)
        node_outs.append(acc)
    out2d = jnp.concatenate(node_outs, axis=1)
    out = out2d.reshape(B, H, W, -1)
    return jnp.transpose(out, (0, 3, 1, 2)).astype(x.dtype)


if __name__ == "__main__":
    # TODO(synk): the LayerChoice/InputChoice mutation & label-sharing machinery
    # has no Pallas analogue; only the default (first-choice) forward is modeled.
    B, C, H, W = 2, 128, 12, 12  # M = B*H*W = 288: exercises M-tiling + remainder padding

    key = jax.random.PRNGKey(0)
    kx, kw, kb = jax.random.split(key, 3)
    x = jax.random.normal(kx, (B, C, H, W), dtype=jnp.float32)
    # Each (node, op) pair owns an independent deep-copied op -> independent params.
    weights = jax.random.normal(
        kw, (NUM_NODES, NUM_OPS_PER_NODE, C, C), dtype=jnp.float32) * (1.0 / jnp.sqrt(C))
    biases = jax.random.normal(
        kb, (NUM_NODES, NUM_OPS_PER_NODE, 1, C), dtype=jnp.float32) * 0.1

    # block_m=128 at this small size to exercise a >1-step M grid; default 1024 for real shapes.
    out = cell_forward([x], weights, biases, block_m=128)
    out = jax.block_until_ready(out)

    ref = cell_forward_ref([x], weights, biases)
    assert out.shape == (B, NUM_NODES * C, H, W), out.shape
    # bf16 matmul inputs -> looser tolerance than the pure-f32 version.
    assert jnp.allclose(out, ref, atol=1e-2, rtol=1e-2), "mismatch vs reference"

    print("KERNEL_OK")
</pallas_src>

<mosaic_0001>
module attributes {stable_mosaic.version = 11 : i64} {
  func.func @_cell_fused_kernel(%arg0: i32, %arg1: memref<128x128xbf16, #tpu.memory_space<vmem>>, %arg2: memref<128x768xbf16, #tpu.memory_space<vmem>>, %arg3: memref<1x768xf32, #tpu.memory_space<vmem>>, %arg4: memref<128x384xf32, #tpu.memory_space<vmem>>) attributes {dimension_semantics = [#tpu.dimension_semantics<parallel>], iteration_bounds = array<i64: 3>, scalar_prefetch = 0 : i64, scratch_operands = 0 : i64, tpu.core_type = #tpu.core_type<tc>, window_params = [{transform_indices = @transform_0, window_bounds = array<i64: 128, 128>}, {pipeline_mode = #tpu.pipeline_mode<synchronous>, transform_indices = @transform_1, window_bounds = array<i64: 128, 768>}, {pipeline_mode = #tpu.pipeline_mode<synchronous>, transform_indices = @transform_2, window_bounds = array<i64: 1, 768>}, {transform_indices = @transform_3, window_bounds = array<i64: 128, 384>}]} {
    %c0 = arith.constant 0 : index
    %c0_0 = arith.constant 0 : index
    %0 = vector.load %arg1[%c0, %c0_0] : memref<128x128xbf16, #tpu.memory_space<vmem>>, vector<128x128xbf16>
    %c0_1 = arith.constant 0 : index
    %c0_2 = arith.constant 0 : index
    %1 = vector.load %arg2[%c0_1, %c0_2] : memref<128x768xbf16, #tpu.memory_space<vmem>>, vector<128x768xbf16>
    %cst = arith.constant dense<0.000000e+00> : vector<128x768xf32>
    %2 = tpu.matmul %0, %1, %cst {dimension_numbers = #tpu.dot_dimension_numbers<[1], [0], [0], [1], [0, 0, 1, 1], [], []>} : vector<128x128xbf16>, vector<128x768xbf16>, vector<128x768xf32> -> vector<128x768xf32>
    %c0_3 = arith.constant 0 : index
    %c0_4 = arith.constant 0 : index
    %3 = vector.load %arg3[%c0_3, %c0_4] : memref<1x768xf32, #tpu.memory_space<vmem>>, vector<1x768xf32>
    %4 = vector.broadcast %3 : vector<1x768xf32> to vector<128x768xf32>
    %5 = arith.addf %2, %4 : vector<128x768xf32>
    %cst_5 = arith.constant 0.000000e+00 : f32
    %6 = vector.broadcast %cst_5 : f32 to vector<128x768xf32>
    %7 = arith.maximumf %5, %6 : vector<128x768xf32>
    %8 = vector.extract_strided_slice %7 {offsets = [0, 0], sizes = [128, 384], strides = [1, 1]} : vector<128x768xf32> to vector<128x384xf32>
    %9 = vector.extract_strided_slice %7 {offsets = [0, 384], sizes = [128, 384], strides = [1, 1]} : vector<128x768xf32> to vector<128x384xf32>
    %10 = arith.addf %8, %9 : vector<128x384xf32>
    %c0_6 = arith.constant 0 : index
    %c0_7 = arith.constant 0 : index
    %11 = vector.load %arg4[%c0_6, %c0_7] : memref<128x384xf32, #tpu.memory_space<vmem>>, vector<128x384xf32>
    tpu.vector_store %arg4[%c0_6, %c0_7], %10 {strides = array<i32>} : memref<128x384xf32, #tpu.memory_space<vmem>>, vector<128x384xf32>,
    return
  }
  func.func @transform_0(%arg0: i32) -> (i32, i32) {
    %c0_i32 = arith.constant 0 : i32
    %c0_i32_0 = arith.constant 0 : i32
    return %arg0, %c0_i32 : i32, i32
  }
  func.func @transform_1(%arg0: i32) -> (i32, i32) {
    %c0_i32 = arith.constant 0 : i32
    %c0_i32_0 = arith.constant 0 : i32
    %c0_i32_1 = arith.constant 0 : i32
    return %c0_i32, %c0_i32_0 : i32, i32
  }
  func.func @transform_2(%arg0: i32) -> (i32, i32) {
    %c0_i32 = arith.constant 0 : i32
    %c0_i32_0 = arith.constant 0 : i32
    %c0_i32_1 = arith.constant 0 : i32
    return %c0_i32, %c0_i32_0 : i32, i32
  }
  func.func @transform_3(%arg0: i32) -> (i32, i32) {
    %c0_i32 = arith.constant 0 : i32
    %c0_i32_0 = arith.constant 0 : i32
    return %arg0, %c0_i32 : i32, i32
  }
}

</mosaic_0001>

<llo_original>
// kernel: tpu_custom_call.1
$region0: #{tpu_custom_call.1}
  #allocation0 [shape = 'u32[]', space=smem, size = 0x4, offset = 0x4, fixed_abs, tag = 'smem constant byte address 0x4 - core index']
  #allocation1 [shape = 'u32[144,128]{1,0:T(1,128)}', space=vmem, size = 0x12000, scoped, tag = 'internal scratch']
  %s0 = inlined_call_operand.hbm [shape: bf16[384,128], index: 0, kind: input, shape index: {}]
  %s1 = inlined_call_operand.hbm [shape: bf16[128,768], index: 1, kind: input, shape index: {}]
  %s2 = inlined_call_operand.hbm [shape: f32[1,768], index: 2, kind: input, shape index: {}]
  %s3 = inlined_call_operand.hbm [shape: f32[384,384], index: 3, kind: output, shape index: {}]
  %s4 = sld [smem:[#allocation0]]
  $region57: #{tpu_custom_call.1} parent=0
    _
  %s6 = ssub.s32 1, %s4
  %s7 = scalar_select 0, %s6, %s4
  $region1: #{tpu_custom_call.1} parent=0
    #allocation2 [shape = 'u8[65536]{0}', space=vmem, size = 0x10000, scoped, tag = 'input window, operand 0']
    #allocation3 [shape = 's32[2]{0}', space=sflag, size = 0x8, scoped, tag = 'scoped memory for tpu_custom_call.1']
    #allocation4 [shape = 's32[2]{0}', space=sflag, size = 0x8, scoped, tag = 'scoped memory for tpu_custom_call.1']
    #allocation5 [shape = 'u8[196608]{0}', space=vmem, size = 0x30000, scoped, tag = 'input window, operand 1, single buffered']
    #allocation6 [shape = 's32[1]{0}', space=sflag, size = 0x4, scoped, tag = 'scoped memory for tpu_custom_call.1']
    #allocation7 [shape = 'u8[3072]{0}', space=vmem, size = 0xc00, scoped, tag = 'input window, operand 2, single buffered']
    #allocation8 [shape = 'u8[393216]{0}', space=vmem, size = 0x60000, scoped, tag = 'output window, operand 0']
    %8 = vsyncpa [#allocation3], 0
    %s9 = scalar_lea.sflag [#allocation3], 1
    %10 = vsyncpa %s9, 0
    %11 = vsyncpa [#allocation6], 0
    %12 = vsyncpa [#allocation4], 0
    %s13 = scalar_lea.sflag [#allocation4], 1
    %14 = vsyncpa %s13, 0
    loop: start=0, step=1, limit=5
    $region2: #{tpu_custom_call.1} parent=1 // loop_pre_header
      _
    $region3: #{tpu_custom_call.1} parent=1 // loop_header
      %s16 = sphi 0, %s20
      %p17 = scmp.ge.s32.totalorder %s16, 5
      %s26 = sphi 0, %s28
      %s29 = sphi 0, %s26
      %s30 = sphi 0, %s29
      %s46 = sphi 0, %s30
      %s50 = sphi 0, %s50
      %s52 = sphi 0, %s50
      %s53 = sphi 0, %s52
      %s67 = sphi 0, %s53
      %s71 = sphi 0, %s71
      %s73 = sphi 0, %s71
      %s74 = sphi 0, %s73
      %s88 = sphi 0, %s74
      %s94 = sphi 0, %s96
      %s97 = sphi 0, %s94
      %s98 = sphi 0, %s97
      %s114 = sphi 0, %s98
    $region4: #{tpu_custom_call.1} parent=1 // loop_header_branch
      %19 = sbr.rel (%p17) target = $region8
    $region5: #{tpu_custom_call.1} parent=1 // loop_body
      %s21 = ssub.s32 %s16, 1
      %s22 = ssub.s32 %s16, 2
      %s23 = sadd.s32 %s16, 1
      %s24 = ssub.s32 %s16, %s23
      %p25 = scmp.eq.s32.totalorder %s24, 0
      %s27 = sadd.s32 %s26, 1
      %s28 = scalar_select %p25, %s26, %s27
      %p31 = pneg %p25
      %p32 = scmp.eq.s32.totalorder %s16, 2
      %p33 = por %p31, %p32
      %p34 = scmp.ne.s32.totalorder %s26, %s29
      %p35 = scmp.eq.s32.totalorder %s16, 0
      %p36 = por %p34, %p35
      %p37 = scmp.ne.s32.totalorder %s26, %s29
      %p38 = scmp.eq.s32.totalorder %s21, 2
      %p39 = por %p37, %p38
      %p40 = scmp.ne.s32.totalorder %s29, %s30
      %p41 = scmp.eq.s32.totalorder %s21, 0
      %p42 = por %p40, %p41
      %p43 = scmp.ne.s32.totalorder %s29, %s30
      %p44 = scmp.eq.s32.totalorder %s22, 2
      %p45 = por %p43, %p44
      %p47 = scmp.ne.s32.totalorder %s30, %s46
      %p48 = scmp.eq.s32.totalorder %s22, 0
      %p49 = por %p47, %p48
      %s51 = sadd.s32 %s50, 1
      %p54 = scmp.eq.s32.totalorder %s16, 2
      %p55 = scmp.ne.s32.totalorder %s50, %s52
      %p56 = scmp.eq.s32.totalorder %s16, 0
      %p57 = por %p55, %p56
      %p58 = scmp.ne.s32.totalorder %s50, %s52
      %p59 = scmp.eq.s32.totalorder %s21, 2
      %p60 = por %p58, %p59
      %p61 = scmp.ne.s32.totalorder %s52, %s53
      %p62 = scmp.eq.s32.totalorder %s21, 0
      %p63 = por %p61, %p62
      %p64 = scmp.ne.s32.totalorder %s52, %s53
      %p65 = scmp.eq.s32.totalorder %s22, 2
      %p66 = por %p64, %p65
      %p68 = scmp.ne.s32.totalorder %s53, %s67
      %p69 = scmp.eq.s32.totalorder %s22, 0
      %p70 = por %p68, %p69
      %s72 = sadd.s32 %s71, 1
      %p75 = scmp.eq.s32.totalorder %s16, 2
      %p76 = scmp.ne.s32.totalorder %s71, %s73
      %p77 = scmp.eq.s32.totalorder %s16, 0
      %p78 = por %p76, %p77
      %p79 = scmp.ne.s32.totalorder %s71, %s73
      %p80 = scmp.eq.s32.totalorder %s21, 2
      %p81 = por %p79, %p80
      %p82 = scmp.ne.s32.totalorder %s73, %s74
      %p83 = scmp.eq.s32.totalorder %s21, 0
      %p84 = por %p82, %p83
      %p85 = scmp.ne.s32.totalorder %s73, %s74
      %p86 = scmp.eq.s32.totalorder %s22, 2
      %p87 = por %p85, %p86
      %p89 = scmp.ne.s32.totalorder %s74, %s88
      %p90 = scmp.eq.s32.totalorder %s22, 0
      %p91 = por %p89, %p90
      %s92 = ssub.s32 %s16, %s23
      %p93 = scmp.eq.s32.totalorder %s92, 0
      %s95 = sadd.s32 %s94, 1
      %s96 = scalar_select %p93, %s94, %s95
      %p99 = pneg %p93
      %p100 = scmp.eq.s32.totalorder %s16, 2
      %p101 = por %p99, %p100
      %p102 = scmp.ne.s32.totalorder %s94, %s97
      %p103 = scmp.eq.s32.totalorder %s16, 0
      %p104 = por %p102, %p103
      %p105 = scmp.ne.s32.totalorder %s94, %s97
      %p106 = scmp.eq.s32.totalorder %s21, 2
      %p107 = por %p105, %p106
      %p108 = scmp.ne.s32.totalorder %s97, %s98
      %p109 = scmp.eq.s32.totalorder %s21, 0
      %p110 = por %p108, %p109
      %p111 = scmp.ne.s32.totalorder %s97, %s98
      %p112 = scmp.eq.s32.totalorder %s22, 2
      %p113 = por %p111, %p112
      %p115 = scmp.ne.s32.totalorder %s98, %s114
      %p116 = scmp.eq.s32.totalorder %s22, 0
      %p117 = por %p115, %p116
      %p118 = scmp.le.s32.totalorder 1, %s16
      %p119 = scmp.lt.s32.totalorder %s16, 4
      %p120 = pnand %p118, %p119
      %p121 = pneg %p120
      // Predicated region
      $region9: #{tpu_custom_call.1} parent=5 // pred_check
        _
      $region10: #{tpu_custom_call.1} parent=5 // pred_check_branch
        %123 = sbr.rel (%p120) target = $region12
      $region11: #{tpu_custom_call.1} parent=5 // pred_region
        %s124 = ssub.s32 %s16, 1
        // Predicated region
        $region13: #{tpu_custom_call.1} parent=11 // pred_check
          %p125 = pneg %p63
        $region14: #{tpu_custom_call.1} parent=11 // pred_check_branch
          %127 = sbr.rel (%p125) target = $region16
        $region15: #{tpu_custom_call.1} parent=11 // pred_region
          %s129 = ssub.s32 6144, 6144
          %130 = vsyncadd [#allocation6], %s129
          %s131 = sshll.u32 [#allocation5], 4
          %s132 = int_to_ptr.vmem [resolvable:$true] %s131
          %137 = dma.hbm_to_vmem [thread:$0]  %s1, 6144, %s132, [#allocation6], 384, 384, 24
        $region16: #{tpu_custom_call.1} parent=11 // pred_fallthru
          _
        // Predicated region
        $region17: #{tpu_custom_call.1} parent=11 // pred_check
          %p138 = pneg %p84
        $region18: #{tpu_custom_call.1} parent=11 // pred_check_branch
          %140 = sbr.rel (%p138) target = $region20
        $region19: #{tpu_custom_call.1} parent=11 // pred_region
          %s142 = ssub.s32 96, 96
          %143 = vsyncadd [#allocation6], %s142
          %s145 = sshll.u32 [#allocation7], 4
          %s146 = int_to_ptr.vmem [resolvable:$true] %s145
          %148 = dma.hbm_to_vmem [thread:$0]  %s2, 96, %s146, [#allocation6]
        $region20: #{tpu_custom_call.1} parent=11 // pred_fallthru
          _
      $region12: #{tpu_custom_call.1} parent=5 // pred_fallthru
        _
      %p149 = scmp.lt.s32.totalorder %s16, 3
      // Predicated region
      $region21: #{tpu_custom_call.1} parent=5 // pred_check
        %p150 = pneg %p149
      $region22: #{tpu_custom_call.1} parent=5 // pred_check_branch
        %152 = sbr.rel (%p150) target = $region24
      $region23: #{tpu_custom_call.1} parent=5 // pred_region
        // Predicated region
        $region25: #{tpu_custom_call.1} parent=23 // pred_check
          %p153 = pneg %p36
        $region26: #{tpu_custom_call.1} parent=23 // pred_check_branch
          %155 = sbr.rel (%p153) target = $region28
        $region27: #{tpu_custom_call.1} parent=23 // pred_region
          %s156 = sand.u32 %s26, 1
          %s157 = scalar_lea.sflag [#allocation3], %s156
          %s158 = sand.u32 %s26, 1
          %s159 = smul.addr %s158, 64
          %s160 = scalar_lea.vmem [#allocation2], %s159
          %s161 = smul.u32 16, %s16
          %s163 = ssub.s32 1024, 1024
          %164 = vsyncadd %s157, %s163
          %s165 = smul.addr %s161, 64
          %s166 = scalar_lea.hbm %s0, %s165
          %s167 = sshll.u32 %s160, 4
          %s168 = int_to_ptr.vmem [resolvable:$true] %s167
          %173 = dma.hbm_to_vmem [thread:$0]  %s166, 1024, %s168, %s157, 64, 64, 4
        $region28: #{tpu_custom_call.1} parent=23 // pred_fallthru
          _
      $region24: #{tpu_custom_call.1} parent=5 // pred_fallthru
        _
      %p174 = scmp.le.s32.totalorder 1, %s16
      %p175 = scmp.lt.s32.totalorder %s16, 4
      %p176 = pnand %p174, %p175
      %p177 = pneg %p176
      // Predicated region
      $region29: #{tpu_custom_call.1} parent=5 // pred_check
        _
      $region30: #{tpu_custom_call.1} parent=5 // pred_check_branch
        %179 = sbr.rel (%p176) target = $region32
      $region31: #{tpu_custom_call.1} parent=5 // pred_region
        %s180 = ssub.s32 %s16, 1
        %s181 = sand.u32 %s29, 1
        %s182 = scalar_lea.sflag [#allocation3], %s181
        %s183 = sand.u32 %s29, 1
        %s184 = smul.addr %s183, 64
        %s185 = scalar_lea.vmem [#allocation2], %s184
        // Predicated region
        $region33: #{tpu_custom_call.1} parent=31 // pred_check
          %p186 = pneg %p42
        $region34: #{tpu_custom_call.1} parent=31 // pred_check_branch
          %188 = sbr.rel (%p186) target = $region36
        $region35: #{tpu_custom_call.1} parent=31 // pred_region
          %189 = dma.done %s182, 1024
        $region36: #{tpu_custom_call.1} parent=31 // pred_fallthru
          _
        // Predicated region
        $region37: #{tpu_custom_call.1} parent=31 // pred_check
          %p190 = pneg %p63
        $region38: #{tpu_custom_call.1} parent=31 // pred_check_branch
          %192 = sbr.rel (%p190) target = $region40
        $region39: #{tpu_custom_call.1} parent=31 // pred_region
          %193 = dma.done [#allocation6], 6144
        $region40: #{tpu_custom_call.1} parent=31 // pred_fallthru
          _
        // Predicated region
        $region41: #{tpu_custom_call.1} parent=31 // pred_check
          %p194 = pneg %p84
        $region42: #{tpu_custom_call.1} parent=31 // pred_check_branch
          %196 = sbr.rel (%p194) target = $region44
        $region43: #{tpu_custom_call.1} parent=31 // pred_region
          %197 = dma.done [#allocation6], 96
        $region44: #{tpu_custom_call.1} parent=31 // pred_fallthru
          _
        %s198 = sand.u32 %s29, 1
        %s199 = scalar_lea.sflag [#allocation3], %s198
        %s200 = sand.u32 %s29, 1
        %s201 = smul.addr %s200, 64
        %s202 = scalar_lea.vmem [#allocation2], %s201
        %p203 = pneg %p42
        %p204 = pneg %p39
        %p205 = pneg %p63
        %p206 = pneg %p60
        %p207 = pneg %p84
        %p208 = pneg %p81
        %p209 = pneg %p110
        %p210 = pneg %p107
        %s211 = sand.u32 %s97, 1
        %s212 = scalar_lea.sflag [#allocation4], %s211
        %s213 = sand.u32 %s97, 1
        %s214 = smul.addr %s213, 384
        %s215 = scalar_lea.vmem [#allocation8], %s214
        %s216 = smul.u32 16, %s21
        %s217 = smul.u32 16, %s21
        %v219 = vld [vmem:[%s185] sm:$0xf]
        %v220 = vld [vmem:[%s185 + $0x4] sm:$0xf]
        %v221 = vld [vmem:[%s185 + $0x8] sm:$0xf]
        %v222 = vld [vmem:[%s185 + $0xc] sm:$0xf]
        %v223 = vld [vmem:[%s185 + $0x10] sm:$0xf]
        %v224 = vld [vmem:[%s185 + $0x14] sm:$0xf]
        %v225 = vld [vmem:[%s185 + $0x18] sm:$0xf]
        %v226 = vld [vmem:[%s185 + $0x1c] sm:$0xf]
        %v227 = vld [vmem:[%s185 + $0x20] sm:$0xf]
        %v228 = vld [vmem:[%s185 + $0x24] sm:$0xf]
        %v229 = vld [vmem:[%s185 + $0x28] sm:$0xf]
        %v230 = vld [vmem:[%s185 + $0x2c] sm:$0xf]
        %v231 = vld [vmem:[%s185 + $0x30] sm:$0xf]
        %v232 = vld [vmem:[%s185 + $0x34] sm:$0xf]
        %v233 = vld [vmem:[%s185 + $0x38] sm:$0xf]
        %v234 = vld [vmem:[%s185 + $0x3c] sm:$0xf]
        %v235 = vld [vmem:[#allocation5] sm:$0xff]
        %v236 = vld [vmem:[#allocation5 + $0x8] sm:$0xff]
        %v237 = vld [vmem:[#allocation5 + $0x10] sm:$0xff]
        %v238 = vld [vmem:[#allocation5 + $0x18] sm:$0xff]
        %v239 = vld [vmem:[#allocation5 + $0x20] sm:$0xff]
        %v240 = vld [vmem:[#allocation5 + $0x28] sm:$0xff]
        %v241 = vld [vmem:[#allocation5 + $0x30] sm:$0xff]
        %v242 = vld [vmem:[#allocation5 + $0x38] sm:$0xff]
        %v243 = vld [vmem:[#allocation5 + $0x40] sm:$0xff]
        %v244 = vld [vmem:[#allocation5 + $0x48] sm:$0xff]
        %v245 = vld [vmem:[#allocation5 + $0x50] sm:$0xff]
        %v246 = vld [vmem:[#allocation5 + $0x58] sm:$0xff]
        %v247 = vld [vmem:[#allocation5 + $0x60] sm:$0xff]
        %v248 = vld [vmem:[#allocation5 + $0x68] sm:$0xff]
        %v249 = vld [vmem:[#allocation5 + $0x70] sm:$0xff]
        %v250 = vld [vmem:[#allocation5 + $0x78] sm:$0xff]
        %v251 = vld [vmem:[#allocation5 + $0x80] sm:$0xff]
        %v252 = vld [vmem:[#allocation5 + $0x88] sm:$0xff]
        %v253 = vld [vmem:[#allocation5 + $0x90] sm:$0xff]
        %v254 = vld [vmem:[#allocation5 + $0x98] sm:$0xff]
        %v255 = vld [vmem:[#allocation5 + $0xa0] sm:$0xff]
        %v256 = vld [vmem:[#allocation5 + $0xa8] sm:$0xff]
        %v257 = vld [vmem:[#allocation5 + $0xb0] sm:$0xff]
        %v258 = vld [vmem:[#allocation5 + $0xb8] sm:$0xff]
        %v259 = vld [vmem:[#allocation5 + $0xc0] sm:$0xff]
        %v260 = vld [vmem:[#allocation5 + $0xc8] sm:$0xff]
        %v261 = vld [vmem:[#allocation5 + $0xd0] sm:$0xff]
        %v262 = vld [vmem:[#allocation5 + $0xd8] sm:$0xff]
        %v263 = vld [vmem:[#allocation5 + $0xe0] sm:$0xff]
        %v264 = vld [vmem:[#allocation5 + $0xe8] sm:$0xff]
        %v265 = vld [vmem:[#allocation5 + $0xf0] sm:$0xff]
        %v266 = vld [vmem:[#allocation5 + $0xf8] sm:$0xff]
        %v267 = vld [vmem:[#allocation5 + $0x100] sm:$0xff]
        %v268 = vld [vmem:[#allocation5 + $0x108] sm:$0xff]
        %v269 = vld [vmem:[#allocation5 + $0x110] sm:$0xff]
        %v270 = vld [vmem:[#allocation5 + $0x118] sm:$0xff]
        %v271 = vld [vmem:[#allocation5 + $0x120] sm:$0xff]
        %v272 = vld [vmem:[#allocation5 + $0x128] sm:$0xff]
        %v273 = vld [vmem:[#allocation5 + $0x130] sm:$0xff]
        %v274 = vld [vmem:[#allocation5 + $0x138] sm:$0xff]
        %v275 = vld [vmem:[#allocation5 + $0x140] sm:$0xff]
        %v276 = vld [vmem:[#allocation5 + $0x148] sm:$0xff]
        %v277 = vld [vmem:[#allocation5 + $0x150] sm:$0xff]
        %v278 = vld [vmem:[#allocation5 + $0x158] sm:$0xff]
        %v279 = vld [vmem:[#allocation5 + $0x160] sm:$0xff]
        %v280 = vld [vmem:[#allocation5 + $0x168] sm:$0xff]
        %v281 = vld [vmem:[#allocation5 + $0x170] sm:$0xff]
        %v282 = vld [vmem:[#allocation5 + $0x178] sm:$0xff]
        %v283 = vld [vmem:[#allocation7] sm:$0x3f]
        %v285 = vlaneseq
        %v286 = vshrl.u32 %v285, 7
        %v287 = vsub.s32 0, %v286
        %v288 = vrot.slane %v283, %v287
        %v289 = vlaneseq
        %v290 = vshrl.u32 %v289, 7
        %v291 = vsub.s32 1, %v290
        %v292 = vrot.slane %v283, %v291
        %v293 = vlaneseq
        %v294 = vshrl.u32 %v293, 7
        %v295 = vsub.s32 2, %v294
        %v296 = vrot.slane %v283, %v295
        %v297 = vlaneseq
        %v298 = vshrl.u32 %v297, 7
        %v299 = vsub.s32 3, %v298
        %v300 = vrot.slane %v283, %v299
        %v301 = vlaneseq
        %v302 = vshrl.u32 %v301, 7
        %v303 = vsub.s32 4, %v302
        %v304 = vrot.slane %v283, %v303
        %v305 = vlaneseq
        %v306 = vshrl.u32 %v305, 7
        %v307 = vsub.s32 5, %v306
        %v308 = vrot.slane %v283, %v307
        %v331 = vunpack.c.l.b16 %v219
        %v332 = vunpack.c.l.b16 %v220
        %v333 = vunpack.c.l.b16 %v221
        %v334 = vunpack.c.l.b16 %v222
        %v335 = vunpack.c.l.b16 %v223
        %v336 = vunpack.c.l.b16 %v224
        %v337 = vunpack.c.l.b16 %v225
        %v338 = vunpack.c.l.b16 %v226
        %v339 = vunpack.c.l.b16 %v227
        %v340 = vunpack.c.l.b16 %v228
        %v341 = vunpack.c.l.b16 %v229
        %v342 = vunpack.c.l.b16 %v230
        %v343 = vunpack.c.l.b16 %v231
        %v344 = vunpack.c.l.b16 %v232
        %v345 = vunpack.c.l.b16 %v233
        %v346 = vunpack.c.l.b16 %v234
        %v347 = vpack.c.b16 %v332, %v331
        %v348 = vpack.c.b16 %v334, %v333
        %v349 = vpack.c.b16 %v336, %v335
        %v350 = vpack.c.b16 %v338, %v337
        %v351 = vpack.c.b16 %v340, %v339
        %v352 = vpack.c.b16 %v342, %v341
        %v353 = vpack.c.b16 %v344, %v343
        %v354 = vpack.c.b16 %v346, %v345
        %v411 = vunpack.c.l.b16 %v235
        %v412 = vunpack.c.h.b16 %v235
        %v413 = vunpack.c.l.b16 %v236
        %v414 = vunpack.c.h.b16 %v236
        %v415 = vunpack.c.l.b16 %v237
        %v416 = vunpack.c.h.b16 %v237
        %v417 = vunpack.c.l.b16 %v238
        %v418 = vunpack.c.h.b16 %v238
        %v419 = vunpack.c.l.b16 %v239
        %v420 = vunpack.c.h.b16 %v239
        %v421 = vunpack.c.l.b16 %v240
        %v422 = vunpack.c.h.b16 %v240
        %v423 = vunpack.c.l.b16 %v241
        %v424 = vunpack.c.h.b16 %v241
        %v425 = vunpack.c.l.b16 %v242
        %v426 = vunpack.c.h.b16 %v242
        %v427 = vunpack.c.l.b16 %v243
        %v428 = vunpack.c.h.b16 %v243
        %v429 = vunpack.c.l.b16 %v244
        %v430 = vunpack.c.h.b16 %v244
        %v431 = vunpack.c.l.b16 %v245
        %v432 = vunpack.c.h.b16 %v245
        %v433 = vunpack.c.l.b16 %v246
        %v434 = vunpack.c.h.b16 %v246
        %v435 = vunpack.c.l.b16 %v247
        %v436 = vunpack.c.h.b16 %v247
        %v437 = vunpack.c.l.b16 %v248
        %v438 = vunpack.c.h.b16 %v248
        %v439 = vunpack.c.l.b16 %v249
        %v440 = vunpack.c.h.b16 %v249
        %v441 = vunpack.c.l.b16 %v250
        %v442 = vunpack.c.h.b16 %v250
        %v443 = vunpack.c.l.b16 %v251
        %v444 = vunpack.c.h.b16 %v251
        %v445 = vunpack.c.l.b16 %v252
        %v446 = vunpack.c.h.b16 %v252
        %v447 = vunpack.c.l.b16 %v253
        %v448 = vunpack.c.h.b16 %v253
        %v449 = vunpack.c.l.b16 %v254
        %v450 = vunpack.c.h.b16 %v254
        %v451 = vunpack.c.l.b16 %v255
        %v452 = vunpack.c.h.b16 %v255
        %v453 = vunpack.c.l.b16 %v256
        %v454 = vunpack.c.h.b16 %v256
        %v455 = vunpack.c.l.b16 %v257
        %v456 = vunpack.c.h.b16 %v257
        %v457 = vunpack.c.l.b16 %v258
        %v458 = vunpack.c.h.b16 %v258
        %v459 = vunpack.c.l.b16 %v259
        %v460 = vunpack.c.h.b16 %v259
        %v461 = vunpack.c.l.b16 %v260
        %v462 = vunpack.c.h.b16 %v260
        %v463 = vunpack.c.l.b16 %v261
        %v464 = vunpack.c.h.b16 %v261
        %v465 = vunpack.c.l.b16 %v262
        %v466 = vunpack.c.h.b16 %v262
        %v467 = vunpack.c.l.b16 %v263
        %v468 = vunpack.c.h.b16 %v263
        %v469 = vunpack.c.l.b16 %v264
        %v470 = vunpack.c.h.b16 %v264
        %v471 = vunpack.c.l.b16 %v265
        %v472 = vunpack.c.h.b16 %v265
        %v473 = vunpack.c.l.b16 %v266
        %v474 = vunpack.c.h.b16 %v266
        %v475 = vunpack.c.l.b16 %v267
        %v476 = vunpack.c.h.b16 %v267
        %v477 = vunpack.c.l.b16 %v268
        %v478 = vunpack.c.h.b16 %v268
        %v479 = vunpack.c.l.b16 %v269
        %v480 = vunpack.c.h.b16 %v269
        %v481 = vunpack.c.l.b16 %v270
        %v482 = vunpack.c.h.b16 %v270
        %v483 = vunpack.c.l.b16 %v271
        %v484 = vunpack.c.h.b16 %v271
        %v485 = vunpack.c.l.b16 %v272
        %v486 = vunpack.c.h.b16 %v272
        %v487 = vunpack.c.l.b16 %v273
        %v488 = vunpack.c.h.b16 %v273
        %v489 = vunpack.c.l.b16 %v274
        %v490 = vunpack.c.h.b16 %v274
        %v491 = vunpack.c.l.b16 %v275
        %v492 = vunpack.c.h.b16 %v275
        %v493 = vunpack.c.l.b16 %v276
        %v494 = vunpack.c.h.b16 %v276
        %v495 = vunpack.c.l.b16 %v277
        %v496 = vunpack.c.h.b16 %v277
        %v497 = vunpack.c.l.b16 %v278
        %v498 = vunpack.c.h.b16 %v278
        %v499 = vunpack.c.l.b16 %v279
        %v500 = vunpack.c.h.b16 %v279
        %v501 = vunpack.c.l.b16 %v280
        %v502 = vunpack.c.h.b16 %v280
        %v503 = vunpack.c.l.b16 %v281
        %v504 = vunpack.c.h.b16 %v281
        %v505 = vunpack.c.l.b16 %v282
        %v506 = vunpack.c.h.b16 %v282
        %v507 = vpack.c.b16 %v417, %v411
        %v508 = vpack.c.b16 %v418, %v412
        %v509 = vpack.c.b16 %v419, %v413
        %v510 = vpack.c.b16 %v420, %v414
        %v511 = vpack.c.b16 %v421, %v415
        %v512 = vpack.c.b16 %v422, %v416
        %v513 = vpack.c.b16 %v429, %v423
        %v514 = vpack.c.b16 %v430, %v424
        %v515 = vpack.c.b16 %v431, %v425
        %v516 = vpack.c.b16 %v432, %v426
        %v517 = vpack.c.b16 %v433, %v427
        %v518 = vpack.c.b16 %v434, %v428
        %v519 = vpack.c.b16 %v441, %v435
        %v520 = vpack.c.b16 %v442, %v436
        %v521 = vpack.c.b16 %v443, %v437
        %v522 = vpack.c.b16 %v444, %v438
        %v523 = vpack.c.b16 %v445, %v439
        %v524 = vpack.c.b16 %v446, %v440
        %v525 = vpack.c.b16 %v453, %v447
        %v526 = vpack.c.b16 %v454, %v448
        %v527 = vpack.c.b16 %v455, %v449
        %v528 = vpack.c.b16 %v456, %v450
        %v529 = vpack.c.b16 %v457, %v451
        %v530 = vpack.c.b16 %v458, %v452
        %v531 = vpack.c.b16 %v465, %v459
        %v532 = vpack.c.b16 %v466, %v460
        %v533 = vpack.c.b16 %v467, %v461
        %v534 = vpack.c.b16 %v468, %v462
        %v535 = vpack.c.b16 %v469, %v463
        %v536 = vpack.c.b16 %v470, %v464
        %v537 = vpack.c.b16 %v477, %v471
        %v538 = vpack.c.b16 %v478, %v472
        %v539 = vpack.c.b16 %v479, %v473
        %v540 = vpack.c.b16 %v480, %v474
        %v541 = vpack.c.b16 %v481, %v475
        %v542 = vpack.c.b16 %v482, %v476
        %v543 = vpack.c.b16 %v489, %v483
        %v544 = vpack.c.b16 %v490, %v484
        %v545 = vpack.c.b16 %v491, %v485
        %v546 = vpack.c.b16 %v492, %v486
        %v547 = vpack.c.b16 %v493, %v487
        %v548 = vpack.c.b16 %v494, %v488
        %v549 = vpack.c.b16 %v501, %v495
        %v550 = vpack.c.b16 %v502, %v496
        %v551 = vpack.c.b16 %v503, %v497
        %v552 = vpack.c.b16 %v504, %v498
        %v553 = vpack.c.b16 %v505, %v499
        %v554 = vpack.c.b16 %v506, %v500
        %603 = vmatprep.subr.bf16.mxu0 %v550
        %604 = vmatpush1.bf16.msra.mxu0 %v549
        %605 = vmatprep.subr.bf16.mxu0 %v544
        %606 = vmatpush1.bf16.msra.mxu0 %v543
        %607 = vmatprep.subr.bf16.mxu0 %v538
        %608 = vmatpush1.bf16.msra.mxu0 %v537
        %609 = vmatprep.subr.bf16.mxu0 %v532
        %610 = vmatpush1.bf16.msra.mxu0 %v531
        %611 = vmatprep.subr.bf16.mxu0 %v526
        %612 = vmatpush1.bf16.msra.mxu0 %v525
        %613 = vmatprep.subr.bf16.mxu0 %v520
        %614 = vmatpush1.bf16.msra.mxu0 %v519
        %615 = vmatprep.subr.bf16.mxu0 %v514
        %616 = vmatpush1.bf16.msra.mxu0 %v513
        %617 = vmatprep.subr.bf16.mxu0 %v508
        %618 = vmatpush1.bf16.msra.mxu0 %v507
        %619 = vmatprep.subr.bf16.mxu0 0
        %620 = vmatpush2.bf16.msra.mxu0 0
        %621 = vmatprep.subr.bf16.mxu0 0
        %622 = vmatpush2.bf16.msra.mxu0 0
        %623 = vmatprep.subr.bf16.mxu0 0
        %624 = vmatpush2.bf16.msra.mxu0 0
        %625 = vmatprep.subr.bf16.mxu0 0
        %626 = vmatpush2.bf16.msra.mxu0 0
        %627 = vmatprep.subr.bf16.mxu0 0
        %628 = vmatpush2.bf16.msra.mxu0 0
        %629 = vmatprep.subr.bf16.mxu0 0
        %630 = vmatpush2.bf16.msra.mxu0 0
        %631 = vmatprep.subr.bf16.mxu0 0
        %632 = vmatpush2.bf16.msra.mxu0 0
        %633 = vmatprep.subr.bf16.mxu0 0
        %634 = vmatpush2.bf16.msra.mxu0 0
        %635 = vmatprep.mubr.bf16.mxu0 0
        %636 = vmatmul.mubr.bf16.gmra.mxu0 %v347
        %v637 = vpop.f32.mrf.mxu0
        %v638 = vadd.f32 %v288, %v637
        %v639 = vpop.f32.mrf.mxu0
        %v640 = vadd.f32 %v292, %v639
        %v641 = vpop.f32.mrf.mxu0
        %v642 = vadd.f32 %v288, %v641
        %v643 = vpop.f32.mrf.mxu0
        %v644 = vadd.f32 %v292, %v643
        %645 = vmatprep.mubr.bf16.mxu0 0
        %646 = vmatmul.mubr.bf16.gmra.mxu0 %v348
        %v647 = vpop.f32.mrf.mxu0
        %v648 = vadd.f32 %v288, %v647
        %v649 = vpop.f32.mrf.mxu0
        %v650 = vadd.f32 %v292, %v649
        %v651 = vpop.f32.mrf.mxu0
        %v652 = vadd.f32 %v288, %v651
        %v653 = vpop.f32.mrf.mxu0
        %v654 = vadd.f32 %v292, %v653
        %655 = vmatprep.mubr.bf16.mxu0 0
        %656 = vmatmul.mubr.bf16.gmra.mxu0 %v349
        %v657 = vpop.f32.mrf.mxu0
        %v658 = vadd.f32 %v288, %v657
        %v659 = vpop.f32.mrf.mxu0
        %v660 = vadd.f32 %v292, %v659
        %v661 = vpop.f32.mrf.mxu0
        %v662 = vadd.f32 %v288, %v661
        %v663 = vpop.f32.mrf.mxu0
        %v664 = vadd.f32 %v292, %v663
        %665 = vmatprep.mubr.bf16.mxu0 0
        %666 = vmatmul.mubr.bf16.gmra.mxu0 %v350
        %v667 = vpop.f32.mrf.mxu0
        %v668 = vadd.f32 %v288, %v667
        %v669 = vpop.f32.mrf.mxu0
        %v670 = vadd.f32 %v292, %v669
        %v671 = vpop.f32.mrf.mxu0
        %v672 = vadd.f32 %v288, %v671
        %v673 = vpop.f32.mrf.mxu0
        %v674 = vadd.f32 %v292, %v673
        %675 = vmatprep.mubr.bf16.mxu0 0
        %676 = vmatmul.mubr.bf16.gmra.mxu0 %v351
        %v677 = vpop.f32.mrf.mxu0
        %v678 = vadd.f32 %v288, %v677
        %v679 = vpop.f32.mrf.mxu0
        %v680 = vadd.f32 %v292, %v679
        %v681 = vpop.f32.mrf.mxu0
        %v682 = vadd.f32 %v288, %v681
        %v683 = vpop.f32.mrf.mxu0
        %v684 = vadd.f32 %v292, %v683
        %685 = vmatprep.mubr.bf16.mxu0 0
        %686 = vmatmul.mubr.bf16.gmra.mxu0 %v352
        %v687 = vpop.f32.mrf.mxu0
        %v688 = vadd.f32 %v288, %v687
        %v689 = vpop.f32.mrf.mxu0
        %v690 = vadd.f32 %v292, %v689
        %v691 = vpop.f32.mrf.mxu0
        %v692 = vadd.f32 %v288, %v691
        %v693 = vpop.f32.mrf.mxu0
        %v694 = vadd.f32 %v292, %v693
        %695 = vmatprep.mubr.bf16.mxu0 0
        %696 = vmatmul.mubr.bf16.gmra.mxu0 %v353
        %v697 = vpop.f32.mrf.mxu0
        %v698 = vadd.f32 %v288, %v697
        %v699 = vpop.f32.mrf.mxu0
        %v700 = vadd.f32 %v292, %v699
        %v701 = vpop.f32.mrf.mxu0
        %v702 = vadd.f32 %v288, %v701
        %v703 = vpop.f32.mrf.mxu0
        %v704 = vadd.f32 %v292, %v703
        %705 = vmatprep.mubr.bf16.mxu0 0
        %706 = vmatmul.mubr.bf16.gmra.mxu0 %v354
        %v707 = vpop.f32.mrf.mxu0
        %v708 = vadd.f32 %v288, %v707
        %v709 = vpop.f32.mrf.mxu0
        %v710 = vadd.f32 %v292, %v709
        %v711 = vpop.f32.mrf.mxu0
        %v712 = vadd.f32 %v288, %v711
        %v713 = vpop.f32.mrf.mxu0
        %v714 = vadd.f32 %v292, %v713
        %715 = vdwg.mxu0
        %716 = vmatprep.subr.bf16.mxu0 %v552
        %717 = vmatpush1.bf16.msra.mxu0 %v551
        %718 = vmatprep.subr.bf16.mxu0 %v546
        %719 = vmatpush1.bf16.msra.mxu0 %v545
        %720 = vmatprep.subr.bf16.mxu0 %v540
        %721 = vmatpush1.bf16.msra.mxu0 %v539
        %722 = vmatprep.subr.bf16.mxu0 %v534
        %723 = vmatpush1.bf16.msra.mxu0 %v533
        %724 = vmatprep.subr.bf16.mxu0 %v528
        %725 = vmatpush1.bf16.msra.mxu0 %v527
        %726 = vmatprep.subr.bf16.mxu0 %v522
        %727 = vmatpush1.bf16.msra.mxu0 %v521
        %728 = vmatprep.subr.bf16.mxu0 %v516
        %729 = vmatpush1.bf16.msra.mxu0 %v515
        %730 = vmatprep.subr.bf16.mxu0 %v510
        %731 = vmatpush1.bf16.msra.mxu0 %v509
        %732 = vmatprep.subr.bf16.mxu0 0
        %733 = vmatpush2.bf16.msra.mxu0 0
        %734 = vmatprep.subr.bf16.mxu0 0
        %735 = vmatpush2.bf16.msra.mxu0 0
        %736 = vmatprep.subr.bf16.mxu0 0
        %737 = vmatpush2.bf16.msra.mxu0 0
        %738 = vmatprep.subr.bf16.mxu0 0
        %739 = vmatpush2.bf16.msra.mxu0 0
        %740 = vmatprep.subr.bf16.mxu0 0
        %741 = vmatpush2.bf16.msra.mxu0 0
        %742 = vmatprep.subr.bf16.mxu0 0
        %743 = vmatpush2.bf16.msra.mxu0 0
        %744 = vmatprep.subr.bf16.mxu0 0
        %745 = vmatpush2.bf16.msra.mxu0 0
        %746 = vmatprep.subr.bf16.mxu0 0
        %747 = vmatpush2.bf16.msra.mxu0 0
        %748 = vmatprep.mubr.bf16.mxu0 0
        %749 = vmatmul.mubr.bf16.gmra.mxu0 %v347
        %v750 = vpop.f32.mrf.mxu0
        %v751 = vadd.f32 %v296, %v750
        %v752 = vpop.f32.mrf.mxu0
        %v753 = vadd.f32 %v300, %v752
        %v754 = vpop.f32.mrf.mxu0
        %v755 = vadd.f32 %v296, %v754
        %v756 = vpop.f32.mrf.mxu0
        %v757 = vadd.f32 %v300, %v756
        %758 = vmatprep.mubr.bf16.mxu0 0
        %759 = vmatmul.mubr.bf16.gmra.mxu0 %v348
        %v760 = vpop.f32.mrf.mxu0
        %v761 = vadd.f32 %v296, %v760
        %v762 = vpop.f32.mrf.mxu0
        %v763 = vadd.f32 %v300, %v762
        %v764 = vpop.f32.mrf.mxu0
        %v765 = vadd.f32 %v296, %v764
        %v766 = vpop.f32.mrf.mxu0
        %v767 = vadd.f32 %v300, %v766
        %768 = vmatprep.mubr.bf16.mxu0 0
        %769 = vmatmul.mubr.bf16.gmra.mxu0 %v349
        %v770 = vpop.f32.mrf.mxu0
        %v771 = vadd.f32 %v296, %v770
        %v772 = vpop.f32.mrf.mxu0
        %v773 = vadd.f32 %v300, %v772
        %v774 = vpop.f32.mrf.mxu0
        %v775 = vadd.f32 %v296, %v774
        %v776 = vpop.f32.mrf.mxu0
        %v777 = vadd.f32 %v300, %v776
        %778 = vmatprep.mubr.bf16.mxu0 0
        %779 = vmatmul.mubr.bf16.gmra.mxu0 %v350
        %v780 = vpop.f32.mrf.mxu0
        %v781 = vadd.f32 %v296, %v780
        %v782 = vpop.f32.mrf.mxu0
        %v783 = vadd.f32 %v300, %v782
        %v784 = vpop.f32.mrf.mxu0
        %v785 = vadd.f32 %v296, %v784
        %v786 = vpop.f32.mrf.mxu0
        %v787 = vadd.f32 %v300, %v786
        %788 = vmatprep.mubr.bf16.mxu0 0
        %789 = vmatmul.mubr.bf16.gmra.mxu0 %v351
        %v790 = vpop.f32.mrf.mxu0
        %v791 = vadd.f32 %v296, %v790
        %v792 = vpop.f32.mrf.mxu0
        %v793 = vadd.f32 %v300, %v792
        %v794 = vpop.f32.mrf.mxu0
        %v795 = vadd.f32 %v296, %v794
        %v796 = vpop.f32.mrf.mxu0
        %v797 = vadd.f32 %v300, %v796
        %798 = vmatprep.mubr.bf16.mxu0 0
        %799 = vmatmul.mubr.bf16.gmra.mxu0 %v352
        %v800 = vpop.f32.mrf.mxu0
        %v801 = vadd.f32 %v296, %v800
        %v802 = vpop.f32.mrf.mxu0
        %v803 = vadd.f32 %v300, %v802
        %v804 = vpop.f32.mrf.mxu0
        %v805 = vadd.f32 %v296, %v804
        %v806 = vpop.f32.mrf.mxu0
        %v807 = vadd.f32 %v300, %v806
        %808 = vmatprep.mubr.bf16.mxu0 0
        %809 = vmatmul.mubr.bf16.gmra.mxu0 %v353
        %v810 = vpop.f32.mrf.mxu0
        %v811 = vadd.f32 %v296, %v810
        %v812 = vpop.f32.mrf.mxu0
        %v813 = vadd.f32 %v300, %v812
        %v814 = vpop.f32.mrf.mxu0
        %v815 = vadd.f32 %v296, %v814
        %v816 = vpop.f32.mrf.mxu0
        %v817 = vadd.f32 %v300, %v816
        %818 = vmatprep.mubr.bf16.mxu0 0
        %819 = vmatmul.mubr.bf16.gmra.mxu0 %v354
        %v820 = vpop.f32.mrf.mxu0
        %v821 = vadd.f32 %v296, %v820
        %v822 = vpop.f32.mrf.mxu0
        %v823 = vadd.f32 %v300, %v822
        %v824 = vpop.f32.mrf.mxu0
        %v825 = vadd.f32 %v296, %v824
        %v826 = vpop.f32.mrf.mxu0
        %v827 = vadd.f32 %v300, %v826
        %828 = vdwg.mxu0
        %829 = vmatprep.subr.bf16.mxu0 %v554
        %830 = vmatpush1.bf16.msra.mxu0 %v553
        %831 = vmatprep.subr.bf16.mxu0 %v548
        %832 = vmatpush1.bf16.msra.mxu0 %v547
        %833 = vmatprep.subr.bf16.mxu0 %v542
        %834 = vmatpush1.bf16.msra.mxu0 %v541
        %835 = vmatprep.subr.bf16.mxu0 %v536
        %836 = vmatpush1.bf16.msra.mxu0 %v535
        %837 = vmatprep.subr.bf16.mxu0 %v530
        %838 = vmatpush1.bf16.msra.mxu0 %v529
        %839 = vmatprep.subr.bf16.mxu0 %v524
        %840 = vmatpush1.bf16.msra.mxu0 %v523
        %841 = vmatprep.subr.bf16.mxu0 %v518
        %842 = vmatpush1.bf16.msra.mxu0 %v517
        %843 = vmatprep.subr.bf16.mxu0 %v512
        %844 = vmatpush1.bf16.msra.mxu0 %v511
        %845 = vmatprep.subr.bf16.mxu0 0
        %846 = vmatpush2.bf16.msra.mxu0 0
        %847 = vmatprep.subr.bf16.mxu0 0
        %848 = vmatpush2.bf16.msra.mxu0 0
        %849 = vmatprep.subr.bf16.mxu0 0
        %850 = vmatpush2.bf16.msra.mxu0 0
        %851 = vmatprep.subr.bf16.mxu0 0
        %852 = vmatpush2.bf16.msra.mxu0 0
        %853 = vmatprep.subr.bf16.mxu0 0
        %854 = vmatpush2.bf16.msra.mxu0 0
        %855 = vmatprep.subr.bf16.mxu0 0
        %856 = vmatpush2.bf16.msra.mxu0 0
        %857 = vmatprep.subr.bf16.mxu0 0
        %858 = vmatpush2.bf16.msra.mxu0 0
        %859 = vmatprep.subr.bf16.mxu0 0
        %860 = vmatpush2.bf16.msra.mxu0 0
        %861 = vmatprep.mubr.bf16.mxu0 0
        %862 = vmatmul.mubr.bf16.gmra.mxu0 %v347
        %v863 = vpop.f32.mrf.mxu0
        %v864 = vadd.f32 %v304, %v863
        %v865 = vpop.f32.mrf.mxu0
        %v866 = vadd.f32 %v308, %v865
        %v867 = vpop.f32.mrf.mxu0
        %v868 = vadd.f32 %v304, %v867
        %v869 = vpop.f32.mrf.mxu0
        %v870 = vadd.f32 %v308, %v869
        %871 = vmatprep.mubr.bf16.mxu0 0
        %872 = vmatmul.mubr.bf16.gmra.mxu0 %v348
        %v873 = vpop.f32.mrf.mxu0
        %v874 = vadd.f32 %v304, %v873
        %v875 = vpop.f32.mrf.mxu0
        %v876 = vadd.f32 %v308, %v875
        %v877 = vpop.f32.mrf.mxu0
        %v878 = vadd.f32 %v304, %v877
        %v879 = vpop.f32.mrf.mxu0
        %v880 = vadd.f32 %v308, %v879
        %881 = vmatprep.mubr.bf16.mxu0 0
        %882 = vmatmul.mubr.bf16.gmra.mxu0 %v349
        %v883 = vpop.f32.mrf.mxu0
        %v884 = vadd.f32 %v304, %v883
        %v885 = vpop.f32.mrf.mxu0
        %v886 = vadd.f32 %v308, %v885
        %v887 = vpop.f32.mrf.mxu0
        %v888 = vadd.f32 %v304, %v887
        %v889 = vpop.f32.mrf.mxu0
        %v890 = vadd.f32 %v308, %v889
        %891 = vmatprep.mubr.bf16.mxu0 0
        %892 = vmatmul.mubr.bf16.gmra.mxu0 %v350
        %v893 = vpop.f32.mrf.mxu0
        %v894 = vadd.f32 %v304, %v893
        %v895 = vpop.f32.mrf.mxu0
        %v896 = vadd.f32 %v308, %v895
        %v897 = vpop.f32.mrf.mxu0
        %v898 = vadd.f32 %v304, %v897
        %v899 = vpop.f32.mrf.mxu0
        %v900 = vadd.f32 %v308, %v899
        %901 = vmatprep.mubr.bf16.mxu0 0
        %902 = vmatmul.mubr.bf16.gmra.mxu0 %v351
        %v903 = vpop.f32.mrf.mxu0
        %v904 = vadd.f32 %v304, %v903
        %v905 = vpop.f32.mrf.mxu0
        %v906 = vadd.f32 %v308, %v905
        %v907 = vpop.f32.mrf.mxu0
        %v908 = vadd.f32 %v304, %v907
        %v909 = vpop.f32.mrf.mxu0
        %v910 = vadd.f32 %v308, %v909
        %911 = vmatprep.mubr.bf16.mxu0 0
        %912 = vmatmul.mubr.bf16.gmra.mxu0 %v352
        %v913 = vpop.f32.mrf.mxu0
        %v914 = vadd.f32 %v304, %v913
        %v915 = vpop.f32.mrf.mxu0
        %v916 = vadd.f32 %v308, %v915
        %v917 = vpop.f32.mrf.mxu0
        %v918 = vadd.f32 %v304, %v917
        %v919 = vpop.f32.mrf.mxu0
        %v920 = vadd.f32 %v308, %v919
        %921 = vmatprep.mubr.bf16.mxu0 0
        %922 = vmatmul.mubr.bf16.gmra.mxu0 %v353
        %v923 = vpop.f32.mrf.mxu0
        %v924 = vadd.f32 %v304, %v923
        %v925 = vpop.f32.mrf.mxu0
        %v926 = vadd.f32 %v308, %v925
        %v927 = vpop.f32.mrf.mxu0
        %v928 = vadd.f32 %v304, %v927
        %v929 = vpop.f32.mrf.mxu0
        %v930 = vadd.f32 %v308, %v929
        %931 = vmatprep.mubr.bf16.mxu0 0
        %932 = vmatmul.mubr.bf16.gmra.mxu0 %v354
        %v933 = vpop.f32.mrf.mxu0
        %v934 = vadd.f32 %v304, %v933
        %v935 = vpop.f32.mrf.mxu0
        %v936 = vadd.f32 %v308, %v935
        %v937 = vpop.f32.mrf.mxu0
        %v938 = vadd.f32 %v304, %v937
        %v939 = vpop.f32.mrf.mxu0
        %v940 = vadd.f32 %v308, %v939
        %941 = vdwg.mxu0
        %v942 = vmax.f32 %v638, 0.0
        %v943 = vmax.f32 %v640, 0.0
        %v944 = vmax.f32 %v751, 0.0
        %v945 = vmax.f32 %v753, 0.0
        %v946 = vmax.f32 %v864, 0.0
        %v947 = vmax.f32 %v866, 0.0
        %v948 = vmax.f32 %v642, 0.0
        %v949 = vmax.f32 %v644, 0.0
        %v950 = vmax.f32 %v755, 0.0
        %v951 = vmax.f32 %v757, 0.0
        %v952 = vmax.f32 %v868, 0.0
        %v953 = vmax.f32 %v870, 0.0
        %v954 = vmax.f32 %v648, 0.0
        %v955 = vmax.f32 %v650, 0.0
        %v956 = vmax.f32 %v761, 0.0
        %v957 = vmax.f32 %v763, 0.0
        %v958 = vmax.f32 %v874, 0.0
        %v959 = vmax.f32 %v876, 0.0
        %v960 = vmax.f32 %v652, 0.0
        %v961 = vmax.f32 %v654, 0.0
        %v962 = vmax.f32 %v765, 0.0
        %v963 = vmax.f32 %v767, 0.0
        %v964 = vmax.f32 %v878, 0.0
        %v965 = vmax.f32 %v880, 0.0
        %v966 = vmax.f32 %v658, 0.0
        %v967 = vmax.f32 %v660, 0.0
        %v968 = vmax.f32 %v771, 0.0
        %v969 = vmax.f32 %v773, 0.0
        %v970 = vmax.f32 %v884, 0.0
        %v971 = vmax.f32 %v886, 0.0
        %v972 = vmax.f32 %v662, 0.0
        %v973 = vmax.f32 %v664, 0.0
        %v974 = vmax.f32 %v775, 0.0
        %v975 = vmax.f32 %v777, 0.0
        %v976 = vmax.f32 %v888, 0.0
        %v977 = vmax.f32 %v890, 0.0
        %v978 = vmax.f32 %v668, 0.0
        %v979 = vmax.f32 %v670, 0.0
        %v980 = vmax.f32 %v781, 0.0
        %v981 = vmax.f32 %v783, 0.0
        %v982 = vmax.f32 %v894, 0.0
        %v983 = vmax.f32 %v896, 0.0
        %v984 = vmax.f32 %v672, 0.0
        %v985 = vmax.f32 %v674, 0.0
        %v986 = vmax.f32 %v785, 0.0
        %v987 = vmax.f32 %v787, 0.0
        %v988 = vmax.f32 %v898, 0.0
        %v989 = vmax.f32 %v900, 0.0
        %v990 = vmax.f32 %v678, 0.0
        %v991 = vmax.f32 %v680, 0.0
        %v992 = vmax.f32 %v791, 0.0
        %v993 = vmax.f32 %v793, 0.0
        %v994 = vmax.f32 %v904, 0.0
        %v995 = vmax.f32 %v906, 0.0
        %v996 = vmax.f32 %v682, 0.0
        %v997 = vmax.f32 %v684, 0.0
        %v998 = vmax.f32 %v795, 0.0
        %v999 = vmax.f32 %v797, 0.0
        %v1000 = vmax.f32 %v908, 0.0
        %v1001 = vmax.f32 %v910, 0.0
        %v1002 = vmax.f32 %v688, 0.0
        %v1003 = vmax.f32 %v690, 0.0
        %v1004 = vmax.f32 %v801, 0.0
        %v1005 = vmax.f32 %v803, 0.0
        %v1006 = vmax.f32 %v914, 0.0
        %v1007 = vmax.f32 %v916, 0.0
        %v1008 = vmax.f32 %v692, 0.0
        %v1009 = vmax.f32 %v694, 0.0
        %v1010 = vmax.f32 %v805, 0.0
        %v1011 = vmax.f32 %v807, 0.0
        %v1012 = vmax.f32 %v918, 0.0
        %v1013 = vmax.f32 %v920, 0.0
        %v1014 = vmax.f32 %v698, 0.0
        %v1015 = vmax.f32 %v700, 0.0
        %v1016 = vmax.f32 %v811, 0.0
        %v1017 = vmax.f32 %v813, 0.0
        %v1018 = vmax.f32 %v924, 0.0
        %v1019 = vmax.f32 %v926, 0.0
        %v1020 = vmax.f32 %v702, 0.0
        %v1021 = vmax.f32 %v704, 0.0
        %v1022 = vmax.f32 %v815, 0.0
        %v1023 = vmax.f32 %v817, 0.0
        %v1024 = vmax.f32 %v928, 0.0
        %v1025 = vmax.f32 %v930, 0.0
        %v1026 = vmax.f32 %v708, 0.0
        %v1027 = vmax.f32 %v710, 0.0
        %v1028 = vmax.f32 %v821, 0.0
        %v1029 = vmax.f32 %v823, 0.0
        %v1030 = vmax.f32 %v934, 0.0
        %v1031 = vmax.f32 %v936, 0.0
        %v1032 = vmax.f32 %v712, 0.0
        %v1033 = vmax.f32 %v714, 0.0
        %v1034 = vmax.f32 %v825, 0.0
        %v1035 = vmax.f32 %v827, 0.0
        %v1036 = vmax.f32 %v938, 0.0
        %v1037 = vmax.f32 %v940, 0.0
        %v1038 = vadd.f32 %v942, %v945
        %v1039 = vadd.f32 %v943, %v946
        %v1040 = vadd.f32 %v944, %v947
        %v1041 = vadd.f32 %v948, %v951
        %v1042 = vadd.f32 %v949, %v952
        %v1043 = vadd.f32 %v950, %v953
        %v1044 = vadd.f32 %v954, %v957
        %v1045 = vadd.f32 %v955, %v958
        %v1046 = vadd.f32 %v956, %v959
        %v1047 = vadd.f32 %v960, %v963
        %v1048 = vadd.f32 %v961, %v964
        %v1049 = vadd.f32 %v962, %v965
        %v1050 = vadd.f32 %v966, %v969
        %v1051 = vadd.f32 %v967, %v970
        %v1052 = vadd.f32 %v968, %v971
        %v1053 = vadd.f32 %v972, %v975
        %v1054 = vadd.f32 %v973, %v976
        %v1055 = vadd.f32 %v974, %v977
        %v1056 = vadd.f32 %v978, %v981
        %v1057 = vadd.f32 %v979, %v982
        %v1058 = vadd.f32 %v980, %v983
        %v1059 = vadd.f32 %v984, %v987
        %v1060 = vadd.f32 %v985, %v988
        %v1061 = vadd.f32 %v986, %v989
        %v1062 = vadd.f32 %v990, %v993
        %v1063 = vadd.f32 %v991, %v994
        %v1064 = vadd.f32 %v992, %v995
        %v1065 = vadd.f32 %v996, %v999
        %v1066 = vadd.f32 %v997, %v1000
        %v1067 = vadd.f32 %v998, %v1001
        %v1068 = vadd.f32 %v1002, %v1005
        %v1069 = vadd.f32 %v1003, %v1006
        %v1070 = vadd.f32 %v1004, %v1007
        %v1071 = vadd.f32 %v1008, %v1011
        %v1072 = vadd.f32 %v1009, %v1012
        %v1073 = vadd.f32 %v1010, %v1013
        %v1074 = vadd.f32 %v1014, %v1017
        %v1075 = vadd.f32 %v1015, %v1018
        %v1076 = vadd.f32 %v1016, %v1019
        %v1077 = vadd.f32 %v1020, %v1023
        %v1078 = vadd.f32 %v1021, %v1024
        %v1079 = vadd.f32 %v1022, %v1025
        %v1080 = vadd.f32 %v1026, %v1029
        %v1081 = vadd.f32 %v1027, %v1030
        %v1082 = vadd.f32 %v1028, %v1031
        %v1083 = vadd.f32 %v1032, %v1035
        %v1084 = vadd.f32 %v1033, %v1036
        %v1085 = vadd.f32 %v1034, %v1037
        %1086 = vst [vmem:[%s215] sm:$0xff] %v1038
        %1087 = vst [vmem:[%s215 + $0x8] sm:$0xff] %v1039
        %1088 = vst [vmem:[%s215 + $0x10] sm:$0xff] %v1040
        %1089 = vst [vmem:[%s215 + $0x18] sm:$0xff] %v1041
        %1090 = vst [vmem:[%s215 + $0x20] sm:$0xff] %v1042
        %1091 = vst [vmem:[%s215 + $0x28] sm:$0xff] %v1043
        %1092 = vst [vmem:[%s215 + $0x30] sm:$0xff] %v1044
        %1093 = vst [vmem:[%s215 + $0x38] sm:$0xff] %v1045
        %1094 = vst [vmem:[%s215 + $0x40] sm:$0xff] %v1046
        %1095 = vst [vmem:[%s215 + $0x48] sm:$0xff] %v1047
        %1096 = vst [vmem:[%s215 + $0x50] sm:$0xff] %v1048
        %1097 = vst [vmem:[%s215 + $0x58] sm:$0xff] %v1049
        %1098 = vst [vmem:[%s215 + $0x60] sm:$0xff] %v1050
        %1099 = vst [vmem:[%s215 + $0x68] sm:$0xff] %v1051
        %1100 = vst [vmem:[%s215 + $0x70] sm:$0xff] %v1052
        %1101 = vst [vmem:[%s215 + $0x78] sm:$0xff] %v1053
        %1102 = vst [vmem:[%s215 + $0x80] sm:$0xff] %v1054
        %1103 = vst [vmem:[%s215 + $0x88] sm:$0xff] %v1055
        %1104 = vst [vmem:[%s215 + $0x90] sm:$0xff] %v1056
        %1105 = vst [vmem:[%s215 + $0x98] sm:$0xff] %v1057
        %1106 = vst [vmem:[%s215 + $0xa0] sm:$0xff] %v1058
        %1107 = vst [vmem:[%s215 + $0xa8] sm:$0xff] %v1059
        %1108 = vst [vmem:[%s215 + $0xb0] sm:$0xff] %v1060
        %1109 = vst [vmem:[%s215 + $0xb8] sm:$0xff] %v1061
        %1110 = vst [vmem:[%s215 + $0xc0] sm:$0xff] %v1062
        %1111 = vst [vmem:[%s215 + $0xc8] sm:$0xff] %v1063
        %1112 = vst [vmem:[%s215 + $0xd0] sm:$0xff] %v1064
        %1113 = vst [vmem:[%s215 + $0xd8] sm:$0xff] %v1065
        %1114 = vst [vmem:[%s215 + $0xe0] sm:$0xff] %v1066
        %1115 = vst [vmem:[%s215 + $0xe8] sm:$0xff] %v1067
        %1116 = vst [vmem:[%s215 + $0xf0] sm:$0xff] %v1068
        %1117 = vst [vmem:[%s215 + $0xf8] sm:$0xff] %v1069
        %1118 = vst [vmem:[%s215 + $0x100] sm:$0xff] %v1070
        %1119 = vst [vmem:[%s215 + $0x108] sm:$0xff] %v1071
        %1120 = vst [vmem:[%s215 + $0x110] sm:$0xff] %v1072
        %1121 = vst [vmem:[%s215 + $0x118] sm:$0xff] %v1073
        %1122 = vst [vmem:[%s215 + $0x120] sm:$0xff] %v1074
        %1123 = vst [vmem:[%s215 + $0x128] sm:$0xff] %v1075
        %1124 = vst [vmem:[%s215 + $0x130] sm:$0xff] %v1076
        %1125 = vst [vmem:[%s215 + $0x138] sm:$0xff] %v1077
        %1126 = vst [vmem:[%s215 + $0x140] sm:$0xff] %v1078
        %1127 = vst [vmem:[%s215 + $0x148] sm:$0xff] %v1079
        %1128 = vst [vmem:[%s215 + $0x150] sm:$0xff] %v1080
        %1129 = vst [vmem:[%s215 + $0x158] sm:$0xff] %v1081
        %1130 = vst [vmem:[%s215 + $0x160] sm:$0xff] %v1082
        %1131 = vst [vmem:[%s215 + $0x168] sm:$0xff] %v1083
        %1132 = vst [vmem:[%s215 + $0x170] sm:$0xff] %v1084
        %1133 = vst [vmem:[%s215 + $0x178] sm:$0xff] %v1085
        %s1134 = sand.u32 %s97, 1
        %s1135 = scalar_lea.sflag [#allocation4], %s1134
        %s1136 = sand.u32 %s97, 1
        %s1137 = smul.addr %s1136, 384
        %s1138 = scalar_lea.vmem [#allocation8], %s1137
        // Predicated region
        $region45: #{tpu_custom_call.1} parent=31 // pred_check
          %p1139 = pneg %p107
        $region46: #{tpu_custom_call.1} parent=31 // pred_check_branch
          %1141 = sbr.rel (%p1139) target = $region48
        $region47: #{tpu_custom_call.1} parent=31 // pred_region
          %s1142 = smul.u32 16, %s21
          %s1144 = ssub.s32 6144, 6144
          %1145 = vsyncadd %s1135, %s1144
          %s1146 = smul.addr %s1142, 3
          %s1147 = smul.addr %s1146, 128
          %s1148 = scalar_lea.hbm %s3, %s1147
          %s1149 = sshll.u32 %s1138, 4
          %s1150 = int_to_ptr.vmem [resolvable:$true] %s1149
          %1155 = dma.vmem_to_hbm [thread:$0]  %s1150, 6144, %s1148, %s1135, 384, 384, 24
        $region48: #{tpu_custom_call.1} parent=31 // pred_fallthru
          _
      $region32: #{tpu_custom_call.1} parent=5 // pred_fallthru
        _
      %p1156 = scmp.le.s32.totalorder 2, %s16
      // Predicated region
      $region49: #{tpu_custom_call.1} parent=5 // pred_check
        %p1157 = pneg %p1156
      $region50: #{tpu_custom_call.1} parent=5 // pred_check_branch
        %1159 = sbr.rel (%p1157) target = $region52
      $region51: #{tpu_custom_call.1} parent=5 // pred_region
        %s1160 = ssub.s32 %s16, 2
        // Predicated region
        $region53: #{tpu_custom_call.1} parent=51 // pred_check
          %p1161 = pneg %p113
        $region54: #{tpu_custom_call.1} parent=51 // pred_check_branch
          %1163 = sbr.rel (%p1161) target = $region56
        $region55: #{tpu_custom_call.1} parent=51 // pred_region
          %s1164 = sand.u32 %s98, 1
          %s1165 = scalar_lea.sflag [#allocation4], %s1164
          %s1166 = sand.u32 %s98, 1
          %s1167 = smul.addr %s1166, 384
          %s1168 = scalar_lea.vmem [#allocation8], %s1167
          %1169 = dma.done %s1165, 6144
        $region56: #{tpu_custom_call.1} parent=51 // pred_fallthru
          _
      $region52: #{tpu_custom_call.1} parent=5 // pred_fallthru
        _
    $region6: #{tpu_custom_call.1} parent=1 // loop_footer
      %s20 = sadd.s32 1, %s16
    $region7: #{tpu_custom_call.1} parent=1 // loop_footer_branch
      %15 = sbr.rel target = $region3
    $region8: #{tpu_custom_call.1} parent=1 // loop_exit
      _
    %1170 = vsyncpa [#allocation3], 1
    %s1171 = scalar_lea.sflag [#allocation3], 1
    %1172 = vsyncpa %s1171, 1
    %1173 = vsyncpa [#allocation6], 1
    %1174 = vsyncpa [#allocation4], 1
    %s1175 = scalar_lea.sflag [#allocation4], 1
    %1176 = vsyncpa %s1175, 1

</llo_original>
